<compile_context>
chip_gen: v5e
topology: v5e:2x2
jax: 0.10.0
libtpu: 0.0.40
codegen_flags: <defaults>
</compile_context>

<pallas_src>
import functools

import jax
import jax.numpy as jnp
from jax.experimental import pallas as pl
from jax.experimental.pallas import tpu as pltpu


def _keep_threshold_u8(p):
    """uint8 threshold t so that P(bits >= t) = keep prob ~= 1 - p (1/256 resolution)."""
    return int(min(255, max(0, round(256.0 * float(p)))))


def _element_keep_bits(key, K, N):
    """(K, N) uint8 random stream for the standard (element-wise) dropout mask."""
    return jax.random.bits(key, (K, N), dtype=jnp.uint8)


def _variational_row_scale(key, N, p):
    """(1, N) float32 per-output-row scale in {0, 1/(1-p)} (torch variational mask)."""
    p = float(p)
    if p <= 0.0:
        return jnp.ones((1, N), dtype=jnp.float32)
    keep = jax.random.bernoulli(key, 1.0 - p, (1, N))
    return keep.astype(jnp.float32) * (1.0 / (1.0 - p))


def _wd_linear_kernel(*refs, mode, inv_keep, threshold):
    """One (j, k) grid step: masked-weight tile matmul with f32 accumulation.

    refs layout:
      mode == "none":    x, w, b, o, acc
      mode == "element": x, w, bits, b, o, acc
      mode == "row":     x, w, row_scale, b, o, acc
    """
    if mode == "none":
        x_ref, w_ref, b_ref, o_ref, acc_ref = refs
        m_ref = None
    else:
        x_ref, w_ref, m_ref, b_ref, o_ref, acc_ref = refs

    k = pl.program_id(1)

    @pl.when(k == 0)
    def _init():
        acc_ref[...] = jnp.zeros_like(acc_ref)

    w = w_ref[...]                                      # (tk, tn), compute dtype
    if mode == "element":
        # Integer threshold compare: no shift / int->float convert / fp mul per element.
        keep = m_ref[...].astype(jnp.int32) >= threshold
        w = jnp.where(keep, w, jnp.zeros_like(w))

    acc_ref[...] += jnp.dot(x_ref[...], w, preferred_element_type=jnp.float32)

    @pl.when(k == pl.num_programs(1) - 1)
    def _finalize():
        acc = acc_ref[...]
        if mode == "element":
            acc = acc * inv_keep                        # fold 1/(1-p) once per output tile
        elif mode == "row":
            acc = acc * m_ref[...]                      # (1, tn) lane broadcast; commutes with matmul
        o_ref[...] = (acc + b_ref[...]).astype(o_ref.dtype)


def weight_drop_linear(x, weight_raw, bias, key, *, dropout=0.5, training=True,
                       variational=False, tn=512, tk=1024,
                       compute_dtype=jnp.bfloat16):
    """WeightDrop(nn.Linear(K, N), ['weight'], dropout, variational).forward(x)."""
    B, K = x.shape
    N, K2 = weight_raw.shape
    assert K == K2, "weight / input feature mismatch"
    p = float(dropout)
    assert 0.0 <= p < 1.0, "dropout p must be in [0, 1)"

    tn = min(tn, N)
    tk = min(tk, K)
    assert N % tn == 0 and K % tk == 0, "tile sizes must divide (N, K)"

    # One-time layout / dtype prep outside the kernel: (K, N) weight feeds the
    # MXU natively (no in-kernel transpose); bf16 streaming halves HBM traffic.
    w_kn = weight_raw.T.astype(compute_dtype)
    x_c = x.astype(compute_dtype)
    b_2d = bias.reshape(1, N).astype(jnp.float32)

    if variational:
        # torch variational path: per-output-row mask, applied with training=True
        # regardless of the module's training flag.
        mode = "row"
        mask_op = _variational_row_scale(key, N, p)                 # (1, N) f32
        mask_spec = pl.BlockSpec((1, tn), lambda j, k: (0, j))
    elif training and p > 0.0:
        mode = "element"
        mask_op = _element_keep_bits(key, K, N)                     # (K, N) uint8
        mask_spec = pl.BlockSpec((tk, tn), lambda j, k: (k, j))
    else:
        mode = "none"                                               # F.dropout no-op
        mask_op = None
        mask_spec = None

    kernel = functools.partial(
        _wd_linear_kernel, mode=mode,
        inv_keep=(1.0 / (1.0 - p)) if p > 0.0 else 1.0,
        threshold=_keep_threshold_u8(p))

    in_specs = [pl.BlockSpec((B, tk), lambda j, k: (0, k)),         # x   (B, K)
                pl.BlockSpec((tk, tn), lambda j, k: (k, j))]        # W   (K, N)
    operands = [x_c, w_kn]
    if mask_op is not None:
        in_specs.append(mask_spec)
        operands.append(mask_op)
    in_specs.append(pl.BlockSpec((1, tn), lambda j, k: (0, j)))     # b   (1, N)
    operands.append(b_2d)

    bytes_accessed = int(sum(a.size * a.dtype.itemsize for a in operands) + B * N * 4)
    cost = pl.CostEstimate(flops=2 * B * N * K, transcendentals=0,
                           bytes_accessed=bytes_accessed)

    return pl.pallas_call(
        kernel,
        out_shape=jax.ShapeDtypeStruct((B, N), jnp.float32),
        grid_spec=pltpu.PrefetchScalarGridSpec(
            num_scalar_prefetch=0,
            grid=(N // tn, K // tk),                    # reduction axis (K) last
            in_specs=in_specs,
            out_specs=pl.BlockSpec((B, tn), lambda j, k: (0, j)),
            scratch_shapes=[pltpu.VMEM((B, tn), jnp.float32)]),
        compiler_params=pltpu.CompilerParams(
            dimension_semantics=("parallel", "arbitrary")),
        cost_estimate=cost,
    )(*operands)


if __name__ == "__main__":
    key = jax.random.PRNGKey(0)
    kx, kw, kb, kd, kv = jax.random.split(key, 5)

    B, K, N = 8, 256, 512          # batch, in_features, out_features
    p = 0.5
    tiles = dict(tn=256, tk=128)   # -> grid (N//tn, K//tk) = (2, 2)

    x = jax.random.normal(kx, (B, K), dtype=jnp.float32)
    weight_raw = jax.random.normal(kw, (N, K), dtype=jnp.float32) * 0.05
    bias = jax.random.normal(kb, (N,), dtype=jnp.float32) * 0.01

    hi = jax.lax.Precision.HIGHEST

    # 1) Eval mode, standard path: F.dropout is a no-op -> plain linear.
    y_eval = weight_drop_linear(x, weight_raw, bias, kd, dropout=p,
                                training=False, variational=False,
                                compute_dtype=jnp.float32, **tiles)
    jax.block_until_ready(y_eval)
    ref_eval = jnp.matmul(x, weight_raw.T, precision=hi) + bias
    assert jnp.allclose(y_eval, ref_eval, atol=2e-2), "eval-mode mismatch"

    # 2) Training mode, standard element-wise weight dropout.  The reference is
    #    rebuilt from the same uint8 bit stream the kernel consumes.
    y_tr = weight_drop_linear(x, weight_raw, bias, kd, dropout=p,
                              training=True, variational=False,
                              compute_dtype=jnp.float32, **tiles)
    jax.block_until_ready(y_tr)
    keep = _element_keep_bits(kd, K, N).astype(jnp.int32) >= _keep_threshold_u8(p)
    w_kn_masked = jnp.where(keep, weight_raw.T, 0.0) * (1.0 / (1.0 - p))
    ref_tr = jnp.matmul(x, w_kn_masked, precision=hi) + bias
    assert jnp.allclose(y_tr, ref_tr, atol=2e-2), "training dropout mismatch"

    # 3) Same thing on the default bf16-streaming fast path (loose tolerance).
    y_tr_bf16 = weight_drop_linear(x, weight_raw, bias, kd, dropout=p,
                                   training=True, variational=False, **tiles)
    jax.block_until_ready(y_tr_bf16)
    assert jnp.allclose(y_tr_bf16, ref_tr, atol=2e-1), "bf16 path mismatch"

    # 4) Variational path: per-output-row mask, applied regardless of training.
    y_var = weight_drop_linear(x, weight_raw, bias, kv, dropout=p,
                               training=False, variational=True,
                               compute_dtype=jnp.float32, **tiles)
    jax.block_until_ready(y_var)
    scale = _variational_row_scale(kv, N, p)                   # (1, N)
    ref_var = jnp.matmul(x, weight_raw.T * scale, precision=hi) + bias
    assert jnp.allclose(y_var, ref_var, atol=2e-2), "variational mismatch"

    print("KERNEL_OK")
</pallas_src>

<mosaic_0001>
module attributes {stable_mosaic.version = 11 : i64} {
  func.func @_wd_linear_kernel(%arg0: i32, %arg1: i32, %arg2: memref<8x128xf32, #tpu.memory_space<vmem>>, %arg3: memref<128x256xf32, #tpu.memory_space<vmem>>, %arg4: memref<1x256xf32, #tpu.memory_space<vmem>>, %arg5: memref<8x256xf32, #tpu.memory_space<vmem>>, %arg6: memref<8x256xf32, #tpu.memory_space<vmem>>) attributes {dimension_semantics = [#tpu.dimension_semantics<parallel>, #tpu.dimension_semantics<arbitrary>], iteration_bounds = array<i64: 2, 2>, scalar_prefetch = 0 : i64, scratch_operands = 1 : i64, tpu.core_type = #tpu.core_type<tc>, window_params = [{transform_indices = @transform_0, window_bounds = array<i64: 8, 128>}, {transform_indices = @transform_1, window_bounds = array<i64: 128, 256>}, {transform_indices = @transform_2, window_bounds = array<i64: 1, 256>}, {transform_indices = @transform_3, window_bounds = array<i64: 8, 256>}]} {
    %c0_i32 = arith.constant 0 : i32
    %0 = arith.cmpi eq, %arg1, %c0_i32 : i32
    %1 = arith.extui %0 : i1 to i32
    %c0_i32_0 = arith.constant 0 : i32
    %2 = arith.cmpi ne, %1, %c0_i32_0 : i32
    scf.if %2 {
      %cst_9 = arith.constant 0.000000e+00 : f32
      %12 = vector.broadcast %cst_9 : f32 to vector<8x256xf32>
      %c0_10 = arith.constant 0 : index
      %c0_11 = arith.constant 0 : index
      %13 = vector.load %arg6[%c0_10, %c0_11] : memref<8x256xf32, #tpu.memory_space<vmem>>, vector<8x256xf32>
      tpu.vector_store %arg6[%c0_10, %c0_11], %12 {strides = array<i32>} : memref<8x256xf32, #tpu.memory_space<vmem>>, vector<8x256xf32>,
    } else {
    }
    %c0 = arith.constant 0 : index
    %c0_1 = arith.constant 0 : index
    %3 = vector.load %arg3[%c0, %c0_1] : memref<128x256xf32, #tpu.memory_space<vmem>>, vector<128x256xf32>
    %c0_2 = arith.constant 0 : index
    %c0_3 = arith.constant 0 : index
    %4 = vector.load %arg6[%c0_2, %c0_3] : memref<8x256xf32, #tpu.memory_space<vmem>>, vector<8x256xf32>
    %c0_4 = arith.constant 0 : index
    %c0_5 = arith.constant 0 : index
    %5 = vector.load %arg2[%c0_4, %c0_5] : memref<8x128xf32, #tpu.memory_space<vmem>>, vector<8x128xf32>
    %cst = arith.constant dense<0.000000e+00> : vector<8x256xf32>
    %6 = tpu.matmul %5, %3, %cst {dimension_numbers = #tpu.dot_dimension_numbers<[1], [0], [0], [1], [0, 0, 1, 1], [], []>} : vector<8x128xf32>, vector<128x256xf32>, vector<8x256xf32> -> vector<8x256xf32>
    %7 = arith.addf %4, %6 : vector<8x256xf32>
    %c0_6 = arith.constant 0 : index
    %c0_7 = arith.constant 0 : index
    %8 = vector.load %arg6[%c0_6, %c0_7] : memref<8x256xf32, #tpu.memory_space<vmem>>, vector<8x256xf32>
    tpu.vector_store %arg6[%c0_6, %c0_7], %7 {strides = array<i32>} : memref<8x256xf32, #tpu.memory_space<vmem>>, vector<8x256xf32>,
    %c1_i32 = arith.constant 1 : i32
    %9 = arith.cmpi eq, %arg1, %c1_i32 : i32
    %10 = arith.extui %9 : i1 to i32
    %c0_i32_8 = arith.constant 0 : i32
    %11 = arith.cmpi ne, %10, %c0_i32_8 : i32
    scf.if %11 {
      %c0_9 = arith.constant 0 : index
      %c0_10 = arith.constant 0 : index
      %12 = vector.load %arg6[%c0_9, %c0_10] : memref<8x256xf32, #tpu.memory_space<vmem>>, vector<8x256xf32>
      %c0_11 = arith.constant 0 : index
      %c0_12 = arith.constant 0 : index
      %13 = vector.load %arg4[%c0_11, %c0_12] : memref<1x256xf32, #tpu.memory_space<vmem>>, vector<1x256xf32>
      %14 = vector.broadcast %13 : vector<1x256xf32> to vector<8x256xf32>
      %15 = arith.addf %12, %14 : vector<8x256xf32>
      %c0_13 = arith.constant 0 : index
      %c0_14 = arith.constant 0 : index
      %16 = vector.load %arg5[%c0_13, %c0_14] : memref<8x256xf32, #tpu.memory_space<vmem>>, vector<8x256xf32>
      tpu.vector_store %arg5[%c0_13, %c0_14], %15 {strides = array<i32>} : memref<8x256xf32, #tpu.memory_space<vmem>>, vector<8x256xf32>,
    } else {
    }
    return
  }
  func.func @transform_0(%arg0: i32, %arg1: i32) -> (i32, i32) {
    %c0_i32 = arith.constant 0 : i32
    %c0_i32_0 = arith.constant 0 : i32
    return %c0_i32, %arg1 : i32, i32
  }
  func.func @transform_1(%arg0: i32, %arg1: i32) -> (i32, i32) {
    %c0_i32 = arith.constant 0 : i32
    return %arg1, %arg0 : i32, i32
  }
  func.func @transform_2(%arg0: i32, %arg1: i32) -> (i32, i32) {
    %c0_i32 = arith.constant 0 : i32
    %c0_i32_0 = arith.constant 0 : i32
    return %c0_i32, %arg0 : i32, i32
  }
  func.func @transform_3(%arg0: i32, %arg1: i32) -> (i32, i32) {
    %c0_i32 = arith.constant 0 : i32
    %c0_i32_0 = arith.constant 0 : i32
    return %c0_i32, %arg0 : i32, i32
  }
}

</mosaic_0001>

<llo_original>
// kernel: tpu_custom_call.1
$region0: #{tpu_custom_call.1}
  #allocation0 [shape = 'u32[]', space=smem, size = 0x4, offset = 0x4, fixed_abs, tag = 'smem constant byte address 0x4 - core index']
  #allocation1 [shape = 'u32[72,128]{1,0:T(1,128)}', space=vmem, size = 0x9000, scoped, tag = 'internal scratch']
  #allocation2 [shape = 'f32[8,256]{1,0:T(8,128)}', space=vmem, size = 0x2000, scoped, tag = 'scratch operand']
  %s0 = inlined_call_operand.hbm [shape: f32[8,256], index: 0, kind: input, shape index: {}]
  %s1 = inlined_call_operand.hbm [shape: f32[256,512], index: 1, kind: input, shape index: {}]
  %s2 = inlined_call_operand.hbm [shape: f32[1,512], index: 2, kind: input, shape index: {}]
  %s3 = inlined_call_operand.hbm [shape: f32[8,512], index: 3, kind: output, shape index: {}]
  %s4 = sld [smem:[#allocation0]]
  $region65: #{tpu_custom_call.1} parent=0
    _
  %s6 = ssub.s32 1, %s4
  %s7 = scalar_select 0, %s6, %s4
  $region1: #{tpu_custom_call.1} parent=0
    #allocation3 [shape = 'u8[8192]{0}', space=vmem, size = 0x2000, scoped, tag = 'input window, operand 0']
    #allocation4 [shape = 's32[2]{0}', space=sflag, size = 0x8, scoped, tag = 'scoped memory for tpu_custom_call.1']
    #allocation5 [shape = 's32[2]{0}', space=sflag, size = 0x8, scoped, tag = 'scoped memory for tpu_custom_call.1']
    #allocation6 [shape = 'u8[262144]{0}', space=vmem, size = 0x40000, scoped, tag = 'input window, operand 1']
    #allocation7 [shape = 's32[2]{0}', space=sflag, size = 0x8, scoped, tag = 'scoped memory for tpu_custom_call.1']
    #allocation8 [shape = 'u8[2048]{0}', space=vmem, size = 0x800, scoped, tag = 'input window, operand 2']
    #allocation9 [shape = 'u8[16384]{0}', space=vmem, size = 0x4000, scoped, tag = 'output window, operand 0']
    %8 = vsyncpa [#allocation4], 0
    %s9 = scalar_lea.sflag [#allocation4], 1
    %10 = vsyncpa %s9, 0
    %11 = vsyncpa [#allocation7], 0
    %s12 = scalar_lea.sflag [#allocation7], 1
    %13 = vsyncpa %s12, 0
    %14 = vsyncpa [#allocation5], 0
    %s15 = scalar_lea.sflag [#allocation5], 1
    %16 = vsyncpa %s15, 0
    loop: start=0, step=1, limit=6
    $region2: #{tpu_custom_call.1} parent=1 // loop_pre_header
      _
    $region3: #{tpu_custom_call.1} parent=1 // loop_header
      %s18 = sphi 0, %s22
      %p19 = scmp.ge.s32.totalorder %s18, 6
      %s25 = sphi 0, %s37
      %s26 = sphi 0, %s33
      %s27 = sphi 0, %s25
      %s28 = sphi 0, %s26
      %s29 = sphi 0, %s27
      %s30 = sphi 0, %s28
      %s40 = sphi 0, %s42
      %s43 = sphi 0, %s40
      %s44 = sphi 0, %s43
      %s60 = sphi 0, %s44
      %s68 = sphi 0, %s70
      %s71 = sphi 0, %s68
      %s72 = sphi 0, %s71
      %s88 = sphi 0, %s72
      %s94 = sphi 0, %s96
      %s97 = sphi 0, %s94
      %s98 = sphi 0, %s97
      %s114 = sphi 0, %s98
      %s120 = sphi 0, %s122
      %s123 = sphi 0, %s120
      %s124 = sphi 0, %s123
      %s140 = sphi 0, %s124
    $region4: #{tpu_custom_call.1} parent=1 // loop_header_branch
      %21 = sbr.rel (%p19) target = $region8
    $region5: #{tpu_custom_call.1} parent=1 // loop_body
      %s23 = ssub.s32 %s18, 1
      %s24 = ssub.s32 %s18, 2
      %s31 = sadd.s32 1, %s26
      %p32 = scmp.ge.s32.totalorder %s31, 2
      %s33 = scalar_select %p32, 0, %s31
      %s34 = sadd.s32 1, %s25
      %s35 = scalar_select %p32, %s34, %s25
      %p36 = scmp.ge.s32.totalorder %s35, 2
      %s37 = scalar_select %p36, 0, %s35
      %s38 = ssub.s32 %s26, %s33
      %p39 = scmp.eq.s32.totalorder %s38, 0
      %s41 = sadd.s32 %s40, 1
      %s42 = scalar_select %p39, %s40, %s41
      %p45 = pneg %p39
      %p46 = scmp.eq.s32.totalorder %s18, 3
      %p47 = por %p45, %p46
      %p48 = scmp.ne.s32.totalorder %s40, %s43
      %p49 = scmp.eq.s32.totalorder %s18, 0
      %p50 = por %p48, %p49
      %p51 = scmp.ne.s32.totalorder %s40, %s43
      %p52 = scmp.eq.s32.totalorder %s23, 3
      %p53 = por %p51, %p52
      %p54 = scmp.ne.s32.totalorder %s43, %s44
      %p55 = scmp.eq.s32.totalorder %s23, 0
      %p56 = por %p54, %p55
      %p57 = scmp.ne.s32.totalorder %s43, %s44
      %p58 = scmp.eq.s32.totalorder %s24, 3
      %p59 = por %p57, %p58
      %p61 = scmp.ne.s32.totalorder %s44, %s60
      %p62 = scmp.eq.s32.totalorder %s24, 0
      %p63 = por %p61, %p62
      %s64 = ssub.s32 %s26, %s33
      %s65 = ssub.s32 %s25, %s37
      %s66 = sor.u32 %s64, %s65
      %p67 = scmp.eq.s32.totalorder %s66, 0
      %s69 = sadd.s32 %s68, 1
      %s70 = scalar_select %p67, %s68, %s69
      %p73 = pneg %p67
      %p74 = scmp.eq.s32.totalorder %s18, 3
      %p75 = por %p73, %p74
      %p76 = scmp.ne.s32.totalorder %s68, %s71
      %p77 = scmp.eq.s32.totalorder %s18, 0
      %p78 = por %p76, %p77
      %p79 = scmp.ne.s32.totalorder %s68, %s71
      %p80 = scmp.eq.s32.totalorder %s23, 3
      %p81 = por %p79, %p80
      %p82 = scmp.ne.s32.totalorder %s71, %s72
      %p83 = scmp.eq.s32.totalorder %s23, 0
      %p84 = por %p82, %p83
      %p85 = scmp.ne.s32.totalorder %s71, %s72
      %p86 = scmp.eq.s32.totalorder %s24, 3
      %p87 = por %p85, %p86
      %p89 = scmp.ne.s32.totalorder %s72, %s88
      %p90 = scmp.eq.s32.totalorder %s24, 0
      %p91 = por %p89, %p90
      %s92 = ssub.s32 %s25, %s37
      %p93 = scmp.eq.s32.totalorder %s92, 0
      %s95 = sadd.s32 %s94, 1
      %s96 = scalar_select %p93, %s94, %s95
      %p99 = pneg %p93
      %p100 = scmp.eq.s32.totalorder %s18, 3
      %p101 = por %p99, %p100
      %p102 = scmp.ne.s32.totalorder %s94, %s97
      %p103 = scmp.eq.s32.totalorder %s18, 0
      %p104 = por %p102, %p103
      %p105 = scmp.ne.s32.totalorder %s94, %s97
      %p106 = scmp.eq.s32.totalorder %s23, 3
      %p107 = por %p105, %p106
      %p108 = scmp.ne.s32.totalorder %s97, %s98
      %p109 = scmp.eq.s32.totalorder %s23, 0
      %p110 = por %p108, %p109
      %p111 = scmp.ne.s32.totalorder %s97, %s98
      %p112 = scmp.eq.s32.totalorder %s24, 3
      %p113 = por %p111, %p112
      %p115 = scmp.ne.s32.totalorder %s98, %s114
      %p116 = scmp.eq.s32.totalorder %s24, 0
      %p117 = por %p115, %p116
      %s118 = ssub.s32 %s25, %s37
      %p119 = scmp.eq.s32.totalorder %s118, 0
      %s121 = sadd.s32 %s120, 1
      %s122 = scalar_select %p119, %s120, %s121
      %p125 = pneg %p119
      %p126 = scmp.eq.s32.totalorder %s18, 3
      %p127 = por %p125, %p126
      %p128 = scmp.ne.s32.totalorder %s120, %s123
      %p129 = scmp.eq.s32.totalorder %s18, 0
      %p130 = por %p128, %p129
      %p131 = scmp.ne.s32.totalorder %s120, %s123
      %p132 = scmp.eq.s32.totalorder %s23, 3
      %p133 = por %p131, %p132
      %p134 = scmp.ne.s32.totalorder %s123, %s124
      %p135 = scmp.eq.s32.totalorder %s23, 0
      %p136 = por %p134, %p135
      %p137 = scmp.ne.s32.totalorder %s123, %s124
      %p138 = scmp.eq.s32.totalorder %s24, 3
      %p139 = por %p137, %p138
      %p141 = scmp.ne.s32.totalorder %s124, %s140
      %p142 = scmp.eq.s32.totalorder %s24, 0
      %p143 = por %p141, %p142
      %p144 = scmp.le.s32.totalorder 1, %s18
      %p145 = scmp.lt.s32.totalorder %s18, 5
      %p146 = pnand %p144, %p145
      %p147 = pneg %p146
      // Predicated region
      $region9: #{tpu_custom_call.1} parent=5 // pred_check
        _
      $region10: #{tpu_custom_call.1} parent=5 // pred_check_branch
        %149 = sbr.rel (%p146) target = $region12
      $region11: #{tpu_custom_call.1} parent=5 // pred_region
        %s150 = ssub.s32 %s18, 1
      $region12: #{tpu_custom_call.1} parent=5 // pred_fallthru
        _
      %p151 = scmp.lt.s32.totalorder %s18, 4
      // Predicated region
      $region13: #{tpu_custom_call.1} parent=5 // pred_check
        %p152 = pneg %p151
      $region14: #{tpu_custom_call.1} parent=5 // pred_check_branch
        %154 = sbr.rel (%p152) target = $region16
      $region15: #{tpu_custom_call.1} parent=5 // pred_region
        // Predicated region
        $region17: #{tpu_custom_call.1} parent=15 // pred_check
          %p155 = pneg %p50
        $region18: #{tpu_custom_call.1} parent=15 // pred_check_branch
          %157 = sbr.rel (%p155) target = $region20
        $region19: #{tpu_custom_call.1} parent=15 // pred_region
          %s158 = sand.u32 %s40, 1
          %s159 = scalar_lea.sflag [#allocation4], %s158
          %s160 = sand.u32 %s40, 1
          %s161 = smul.addr %s160, 8
          %s162 = scalar_lea.vmem [#allocation3], %s161
          %164 = vsyncadd %s159, 0
          %s165 = smul.addr %s26, 8
          %s166 = scalar_lea.hbm %s0, %s165
          %s168 = sshll.u32 %s166, 4
          %s169 = int_to_ptr.hbm [resolvable:$true] %s168
          %s170 = sshll.u32 %s162, 4
          %s171 = int_to_ptr.vmem [resolvable:$true] %s170
          %173 = dma.hbm_to_vmem [thread:$0]  %s169, 128, %s171, %s159
        $region20: #{tpu_custom_call.1} parent=15 // pred_fallthru
          _
        // Predicated region
        $region21: #{tpu_custom_call.1} parent=15 // pred_check
          %p174 = pneg %p78
        $region22: #{tpu_custom_call.1} parent=15 // pred_check_branch
          %176 = sbr.rel (%p174) target = $region24
        $region23: #{tpu_custom_call.1} parent=15 // pred_region
          %s177 = sand.u32 %s18, 1
          %s178 = scalar_lea.sflag [#allocation7], %s177
          %s179 = sand.u32 %s68, 1
          %s180 = smul.addr %s179, 256
          %s181 = scalar_lea.vmem [#allocation6], %s180
          %s182 = smul.u32 16, %s26
          %s183 = smul.u32 2, %s25
          %185 = vsyncadd %s178, 0
          %s186 = smul.addr %s182, 4
          %s187 = sadd.s32 %s183, %s186
          %s188 = smul.addr %s187, 8
          %s189 = scalar_lea.hbm %s1, %s188
          %s190 = sshll.u32 %s189, 4
          %s191 = int_to_ptr.hbm [resolvable:$true] %s190
          %s192 = sshll.u32 %s181, 4
          %s193 = int_to_ptr.vmem [resolvable:$true] %s192
          %198 = dma.hbm_to_vmem [thread:$0]  %s191, 4096, %s193, %s178, 512, 256, 16
        $region24: #{tpu_custom_call.1} parent=15 // pred_fallthru
          _
        // Predicated region
        $region25: #{tpu_custom_call.1} parent=15 // pred_check
          %p199 = pneg %p104
        $region26: #{tpu_custom_call.1} parent=15 // pred_check_branch
          %201 = sbr.rel (%p199) target = $region28
        $region27: #{tpu_custom_call.1} parent=15 // pred_region
          %s202 = sand.u32 %s18, 1
          %s203 = scalar_lea.sflag [#allocation7], %s202
          %s204 = sand.u32 %s94, 1
          %s205 = smul.addr %s204, 2
          %s206 = scalar_lea.vmem [#allocation8], %s205
          %s207 = smul.u32 2, %s25
          %209 = vsyncadd %s203, 0
          %s210 = scalar_lea.hbm %s2, %s207
          %s212 = sshll.u32 %s210, 4
          %s213 = int_to_ptr.hbm [resolvable:$true] %s212
          %s214 = sshll.u32 %s206, 4
          %s215 = int_to_ptr.vmem [resolvable:$true] %s214
          %217 = dma.hbm_to_vmem [thread:$0]  %s213, 32, %s215, %s203
        $region28: #{tpu_custom_call.1} parent=15 // pred_fallthru
          _
      $region16: #{tpu_custom_call.1} parent=5 // pred_fallthru
        _
      %p218 = scmp.le.s32.totalorder 1, %s18
      %p219 = scmp.lt.s32.totalorder %s18, 5
      %p220 = pnand %p218, %p219
      %p221 = pneg %p220
      // Predicated region
      $region29: #{tpu_custom_call.1} parent=5 // pred_check
        _
      $region30: #{tpu_custom_call.1} parent=5 // pred_check_branch
        %223 = sbr.rel (%p220) target = $region32
      $region31: #{tpu_custom_call.1} parent=5 // pred_region
        %s224 = ssub.s32 %s18, 1
        %s225 = sand.u32 %s43, 1
        %s226 = scalar_lea.sflag [#allocation4], %s225
        %s227 = sand.u32 %s43, 1
        %s228 = smul.addr %s227, 8
        %s229 = scalar_lea.vmem [#allocation3], %s228
        // Predicated region
        $region33: #{tpu_custom_call.1} parent=31 // pred_check
          %p230 = pneg %p56
        $region34: #{tpu_custom_call.1} parent=31 // pred_check_branch
          %232 = sbr.rel (%p230) target = $region36
        $region35: #{tpu_custom_call.1} parent=31 // pred_region
          %234 = dma.done %s226, 128
        $region36: #{tpu_custom_call.1} parent=31 // pred_fallthru
          _
        %s235 = sand.u32 %s23, 1
        %s236 = scalar_lea.sflag [#allocation7], %s235
        %s237 = sand.u32 %s71, 1
        %s238 = smul.addr %s237, 256
        %s239 = scalar_lea.vmem [#allocation6], %s238
        // Predicated region
        $region37: #{tpu_custom_call.1} parent=31 // pred_check
          %p240 = pneg %p84
        $region38: #{tpu_custom_call.1} parent=31 // pred_check_branch
          %242 = sbr.rel (%p240) target = $region40
        $region39: #{tpu_custom_call.1} parent=31 // pred_region
          %244 = dma.done %s236, 4096
        $region40: #{tpu_custom_call.1} parent=31 // pred_fallthru
          _
        %s245 = sand.u32 %s23, 1
        %s246 = scalar_lea.sflag [#allocation7], %s245
        %s247 = sand.u32 %s97, 1
        %s248 = smul.addr %s247, 2
        %s249 = scalar_lea.vmem [#allocation8], %s248
        // Predicated region
        $region41: #{tpu_custom_call.1} parent=31 // pred_check
          %p250 = pneg %p110
        $region42: #{tpu_custom_call.1} parent=31 // pred_check_branch
          %252 = sbr.rel (%p250) target = $region44
        $region43: #{tpu_custom_call.1} parent=31 // pred_region
          %254 = dma.done %s246, 32
        $region44: #{tpu_custom_call.1} parent=31 // pred_fallthru
          _
        %s255 = sand.u32 %s43, 1
        %s256 = scalar_lea.sflag [#allocation4], %s255
        %s257 = sand.u32 %s43, 1
        %s258 = smul.addr %s257, 8
        %s259 = scalar_lea.vmem [#allocation3], %s258
        %p260 = pneg %p56
        %p261 = pneg %p53
        %s262 = sand.u32 %s23, 1
        %s263 = scalar_lea.sflag [#allocation7], %s262
        %s264 = sand.u32 %s71, 1
        %s265 = smul.addr %s264, 256
        %s266 = scalar_lea.vmem [#allocation6], %s265
        %p267 = pneg %p84
        %p268 = pneg %p81
        %s269 = sand.u32 %s23, 1
        %s270 = scalar_lea.sflag [#allocation7], %s269
        %s271 = sand.u32 %s97, 1
        %s272 = smul.addr %s271, 2
        %s273 = scalar_lea.vmem [#allocation8], %s272
        %p274 = pneg %p110
        %p275 = pneg %p107
        %p276 = pneg %p136
        %p277 = pneg %p133
        %s278 = sand.u32 %s123, 1
        %s279 = scalar_lea.sflag [#allocation5], %s278
        %s280 = sand.u32 %s123, 1
        %s281 = smul.addr %s280, 16
        %s282 = scalar_lea.vmem [#allocation9], %s281
        %s283 = smul.u32 16, %s28
        %s284 = smul.u32 2, %s27
        %s285 = smul.u32 2, %s27
        %s286 = smul.u32 2, %s27
        %p287 = scmp.eq.s32.totalorder %s28, 0
        // Predicated region
        $region45: #{tpu_custom_call.1} parent=31 // pred_check
          %p288 = pneg %p287
        $region46: #{tpu_custom_call.1} parent=31 // pred_check_branch
          %290 = sbr.rel (%p288) target = $region48
        $region47: #{tpu_custom_call.1} parent=31 // pred_region
          %291 = vst [vmem:[#allocation2] sm:$0xff] 0.0
          %292 = vst [vmem:[#allocation2 + $0x8] sm:$0xff] 0.0
        $region48: #{tpu_custom_call.1} parent=31 // pred_fallthru
          _
        %v293 = vld [vmem:[%s239] sm:$0xff]
        %v294 = vld [vmem:[%s239 + $0x8] sm:$0xff]
        %v295 = vld [vmem:[%s239 + $0x10] sm:$0xff]
        %v296 = vld [vmem:[%s239 + $0x18] sm:$0xff]
        %v297 = vld [vmem:[%s239 + $0x20] sm:$0xff]
        %v298 = vld [vmem:[%s239 + $0x28] sm:$0xff]
        %v299 = vld [vmem:[%s239 + $0x30] sm:$0xff]
        %v300 = vld [vmem:[%s239 + $0x38] sm:$0xff]
        %v301 = vld [vmem:[%s239 + $0x40] sm:$0xff]
        %v302 = vld [vmem:[%s239 + $0x48] sm:$0xff]
        %v303 = vld [vmem:[%s239 + $0x50] sm:$0xff]
        %v304 = vld [vmem:[%s239 + $0x58] sm:$0xff]
        %v305 = vld [vmem:[%s239 + $0x60] sm:$0xff]
        %v306 = vld [vmem:[%s239 + $0x68] sm:$0xff]
        %v307 = vld [vmem:[%s239 + $0x70] sm:$0xff]
        %v308 = vld [vmem:[%s239 + $0x78] sm:$0xff]
        %v309 = vld [vmem:[%s239 + $0x80] sm:$0xff]
        %v310 = vld [vmem:[%s239 + $0x88] sm:$0xff]
        %v311 = vld [vmem:[%s239 + $0x90] sm:$0xff]
        %v312 = vld [vmem:[%s239 + $0x98] sm:$0xff]
        %v313 = vld [vmem:[%s239 + $0xa0] sm:$0xff]
        %v314 = vld [vmem:[%s239 + $0xa8] sm:$0xff]
        %v315 = vld [vmem:[%s239 + $0xb0] sm:$0xff]
        %v316 = vld [vmem:[%s239 + $0xb8] sm:$0xff]
        %v317 = vld [vmem:[%s239 + $0xc0] sm:$0xff]
        %v318 = vld [vmem:[%s239 + $0xc8] sm:$0xff]
        %v319 = vld [vmem:[%s239 + $0xd0] sm:$0xff]
        %v320 = vld [vmem:[%s239 + $0xd8] sm:$0xff]
        %v321 = vld [vmem:[%s239 + $0xe0] sm:$0xff]
        %v322 = vld [vmem:[%s239 + $0xe8] sm:$0xff]
        %v323 = vld [vmem:[%s239 + $0xf0] sm:$0xff]
        %v324 = vld [vmem:[%s239 + $0xf8] sm:$0xff]
        %v325 = vld [vmem:[#allocation2] sm:$0xff]
        %v326 = vld [vmem:[#allocation2 + $0x8] sm:$0xff]
        %v327 = vld [vmem:[%s229] sm:$0xff]
        %328 = vmatpush.msra.mxu0 %v323
        %329 = vmatpush.msra.mxu0 %v321
        %330 = vmatpush.msra.mxu0 %v319
        %331 = vmatpush.msra.mxu0 %v317
        %332 = vmatpush.msra.mxu0 %v315
        %333 = vmatpush.msra.mxu0 %v313
        %334 = vmatpush.msra.mxu0 %v311
        %335 = vmatpush.msra.mxu0 %v309
        %336 = vmatpush.msra.mxu0 %v307
        %337 = vmatpush.msra.mxu0 %v305
        %338 = vmatpush.msra.mxu0 %v303
        %339 = vmatpush.msra.mxu0 %v301
        %340 = vmatpush.msra.mxu0 %v299
        %341 = vmatpush.msra.mxu0 %v297
        %342 = vmatpush.msra.mxu0 %v295
        %343 = vmatpush.msra.mxu0 %v293
        %344 = vmatmul.f32.gmra.mxu0 %v327
        %v345 = vpop.f32.mrf.mxu0
        %v346 = vadd.f32 0.0, %v345
        %347 = vdwg.mxu0
        %348 = vmatpush.msra.mxu0 %v324
        %349 = vmatpush.msra.mxu0 %v322
        %350 = vmatpush.msra.mxu0 %v320
        %351 = vmatpush.msra.mxu0 %v318
        %352 = vmatpush.msra.mxu0 %v316
        %353 = vmatpush.msra.mxu0 %v314
        %354 = vmatpush.msra.mxu0 %v312
        %355 = vmatpush.msra.mxu0 %v310
        %356 = vmatpush.msra.mxu0 %v308
        %357 = vmatpush.msra.mxu0 %v306
        %358 = vmatpush.msra.mxu0 %v304
        %359 = vmatpush.msra.mxu0 %v302
        %360 = vmatpush.msra.mxu0 %v300
        %361 = vmatpush.msra.mxu0 %v298
        %362 = vmatpush.msra.mxu0 %v296
        %363 = vmatpush.msra.mxu0 %v294
        %364 = vmatmul.f32.gmra.mxu0 %v327
        %v365 = vpop.f32.mrf.mxu0
        %v366 = vadd.f32 0.0, %v365
        %367 = vdwg.mxu0
        %v368 = vadd.f32 %v325, %v346
        %v369 = vadd.f32 %v326, %v366
        %370 = vst [vmem:[#allocation2] sm:$0xff] %v368
        %371 = vst [vmem:[#allocation2 + $0x8] sm:$0xff] %v369
        %p372 = scmp.eq.s32.totalorder %s28, 1
        // Predicated region
        $region49: #{tpu_custom_call.1} parent=31 // pred_check
          %p373 = pneg %p372
        $region50: #{tpu_custom_call.1} parent=31 // pred_check_branch
          %375 = sbr.rel (%p373) target = $region52
        $region51: #{tpu_custom_call.1} parent=31 // pred_region
          %v376 = vld [vmem:[#allocation2] sm:$0xff]
          %v377 = vld [vmem:[#allocation2 + $0x8] sm:$0xff]
          %v378 = vld [vmem:[%s249] sm:$0x3]
          %v380 = vperm.slane %v378, 0
          %v381 = vperm.slane %v378, 1
          %v384 = vadd.f32 %v376, %v380
          %v385 = vadd.f32 %v377, %v381
          %386 = vst [vmem:[%s282] sm:$0xff] %v384
          %387 = vst [vmem:[%s282 + $0x8] sm:$0xff] %v385
        $region52: #{tpu_custom_call.1} parent=31 // pred_fallthru
          _
        %s388 = sand.u32 %s123, 1
        %s389 = scalar_lea.sflag [#allocation5], %s388
        %s390 = sand.u32 %s123, 1
        %s391 = smul.addr %s390, 16
        %s392 = scalar_lea.vmem [#allocation9], %s391
        // Predicated region
        $region53: #{tpu_custom_call.1} parent=31 // pred_check
          %p393 = pneg %p133
        $region54: #{tpu_custom_call.1} parent=31 // pred_check_branch
          %395 = sbr.rel (%p393) target = $region56
        $region55: #{tpu_custom_call.1} parent=31 // pred_region
          %s396 = smul.u32 2, %s27
          %398 = vsyncadd %s389, 0
          %s399 = smul.addr %s396, 8
          %s400 = scalar_lea.hbm %s3, %s399
          %s402 = sshll.u32 %s392, 4
          %s403 = int_to_ptr.vmem [resolvable:$true] %s402
          %s404 = sshll.u32 %s400, 4
          %s405 = int_to_ptr.hbm [resolvable:$true] %s404
          %407 = dma.vmem_to_hbm [thread:$0]  %s403, 256, %s405, %s389
        $region56: #{tpu_custom_call.1} parent=31 // pred_fallthru
          _
      $region32: #{tpu_custom_call.1} parent=5 // pred_fallthru
        _
      %p408 = scmp.le.s32.totalorder 2, %s18
      // Predicated region
      $region57: #{tpu_custom_call.1} parent=5 // pred_check
        %p409 = pneg %p408
      $region58: #{tpu_custom_call.1} parent=5 // pred_check_branch
        %411 = sbr.rel (%p409) target = $region60
      $region59: #{tpu_custom_call.1} parent=5 // pred_region
        %s412 = ssub.s32 %s18, 2
        // Predicated region
        $region61: #{tpu_custom_call.1} parent=59 // pred_check
          %p413 = pneg %p139
        $region62: #{tpu_custom_call.1} parent=59 // pred_check_branch
          %415 = sbr.rel (%p413) target = $region64
        $region63: #{tpu_custom_call.1} parent=59 // pred_region
          %s416 = sand.u32 %s124, 1
          %s417 = scalar_lea.sflag [#allocation5], %s416
          %s418 = sand.u32 %s124, 1
          %s419 = smul.addr %s418, 16
          %s420 = scalar_lea.vmem [#allocation9], %s419
          %422 = dma.done %s417, 256
        $region64: #{tpu_custom_call.1} parent=59 // pred_fallthru
          _
      $region60: #{tpu_custom_call.1} parent=5 // pred_fallthru
        _
    $region6: #{tpu_custom_call.1} parent=1 // loop_footer
      %s22 = sadd.s32 1, %s18
    $region7: #{tpu_custom_call.1} parent=1 // loop_footer_branch
      %17 = sbr.rel target = $region3
    $region8: #{tpu_custom_call.1} parent=1 // loop_exit
      _
    %423 = vsyncpa [#allocation4], 1
    %s424 = scalar_lea.sflag [#allocation4], 1
    %425 = vsyncpa %s424, 1
    %426 = vsyncpa [#allocation7], 1
    %s427 = scalar_lea.sflag [#allocation7], 1
    %428 = vsyncpa %s427, 1
    %429 = vsyncpa [#allocation5], 1
    %s430 = scalar_lea.sflag [#allocation5], 1
    %431 = vsyncpa %s430, 1

</llo_original>
